<compile_context>
chip_gen: v7x
topology: tpu7x:2x2x1
jax: 0.10.0
libtpu: 0.0.40
codegen_flags: <defaults>
</compile_context>

<pallas_src>
import jax
import jax.numpy as jnp
from jax.experimental import pallas as pl
from jax.experimental.pallas import tpu as pltpu

_LANE = 128           # TPU vreg lane width
_BLOCK_BYTES = 4 << 20  # ~4 MiB per block; 2x(in+out) buffers ~16 MiB


def _cdiv(a, b):
    return -(-a // b)


def _sublane_multiple(dtype):
    itemsize = jnp.dtype(dtype).itemsize
    if itemsize >= 4:
        return 8
    if itemsize == 2:
        return 16
    return 32


def _relu_kernel(x_ref, o_ref):
    # Elementwise ReLU on the whole VMEM tile. Zero is materialized in the
    # input dtype so integer inputs don't promote to float.
    zero = jnp.zeros((), dtype=x_ref.dtype)
    o_ref[...] = jnp.maximum(x_ref[...], zero)


def my_cell_forward(x):
    """Pallas implementation of MyCell.forward: relu(x). Any shape."""
    orig_shape = x.shape
    dtype = x.dtype
    itemsize = jnp.dtype(dtype).itemsize
    total = int(x.size)

    if total == 0:
        return x

    m = _sublane_multiple(dtype)

    # ---- Lane (last) dim: 128-multiple that divides the flat size -> no pad.
    if total % _LANE == 0:
        tile_c = _LANE
        for cand in (1024, 512, 256):
            # Prefer wider tiles, but keep enough rows for a full sublane tile.
            if total % cand == 0 and (total // cand) >= m:
                tile_c = cand
                break
        pad = 0
    else:
        # TODO(synk): handle the <128-element ragged tail with a tiny second
        # pallas_call instead of this pad+slice round trip.
        tile_c = _LANE
        pad = tile_c - (total % tile_c)

    flat = x.reshape(-1)
    if pad:
        flat = jnp.pad(flat, (0, pad))  # ReLU(0) == 0, semantically inert
    padded_total = total + pad
    rows = padded_total // tile_c
    x2d = flat.reshape(rows, tile_c)

    # ---- Sublane (row) dim: dtype-aware multiple, ~4 MiB block cap,
    # and >= 2 grid steps when the input is big enough (v7x dual-TC).
    tile_r_cap = max(m, (_BLOCK_BYTES // itemsize // tile_c) // m * m)
    if rows <= m:
        # Tiny input: one block equal to the full array (always a legal block).
        tile_r = rows
    else:
        half_rows = _cdiv(rows, 2)
        tile_r = min(tile_r_cap, _cdiv(half_rows, m) * m)
    grid = (pl.cdiv(rows, tile_r),)  # ragged last block is masked by Pallas

    out2d = pl.pallas_call(
        _relu_kernel,
        out_shape=jax.ShapeDtypeStruct((rows, tile_c), dtype),
        grid_spec=pltpu.PrefetchScalarGridSpec(
            num_scalar_prefetch=0,
            grid=grid,
            in_specs=[pl.BlockSpec((tile_r, tile_c), lambda i: (i, 0))],
            out_specs=pl.BlockSpec((tile_r, tile_c), lambda i: (i, 0)),
        ),
        compiler_params=pltpu.CompilerParams(
            dimension_semantics=("parallel",),
            # Explicit limit so 4 MiB blocks (double-buffered in+out ~16 MiB)
            # are legal on v5e's 16 MiB scoped default as well as v6e/v7x.
            vmem_limit_bytes=32 << 20,
        ),
        # Mem-bound elementwise op: ~0 flops, one read + one write of the array.
        cost_estimate=pl.CostEstimate(
            flops=total,
            transcendentals=0,
            bytes_accessed=2 * padded_total * itemsize,
        ),
        # Note: input_output_aliases={0: 0} is a small free win when the caller
        # donates x; omitted here because the demo reuses x afterwards.
    )(x2d)

    out_flat = out2d.reshape(-1)
    if pad:
        out_flat = out_flat[:total]
    return out_flat.reshape(orig_shape)


if __name__ == "__main__":
    key = jax.random.PRNGKey(0)
    # Small NCHW input consistent with the module (ReLU is shape-agnostic).
    x = jax.random.normal(key, (2, 4, 16, 16), dtype=jnp.float32)

    fwd = jax.jit(my_cell_forward)
    y = fwd(x)
    y = jax.block_until_ready(y)

    # Sanity check against the pure-JAX reference.
    ref = jnp.maximum(x, 0.0)
    assert y.shape == x.shape and y.dtype == x.dtype
    assert bool(jnp.allclose(y, ref)), "Pallas ReLU mismatch vs reference"

    print("KERNEL_OK")
</pallas_src>

<mosaic_0001>
module attributes {stable_mosaic.version = 11 : i64} {
  func.func @_relu_kernel(%arg0: i32, %arg1: memref<8x256xf32, #tpu.memory_space<vmem>>, %arg2: memref<8x256xf32, #tpu.memory_space<vmem>>) attributes {dimension_semantics = [#tpu.dimension_semantics<parallel>], iteration_bounds = array<i64: 1>, scalar_prefetch = 0 : i64, scratch_operands = 0 : i64, tpu.core_type = #tpu.core_type<tc>, window_params = [{transform_indices = @transform_0, window_bounds = array<i64: 8, 256>}, {transform_indices = @transform_1, window_bounds = array<i64: 8, 256>}]} {
    %c0 = arith.constant 0 : index
    %c0_0 = arith.constant 0 : index
    %0 = vector.load %arg1[%c0, %c0_0] : memref<8x256xf32, #tpu.memory_space<vmem>>, vector<8x256xf32>
    %cst = arith.constant 0.000000e+00 : f32
    %1 = vector.broadcast %cst : f32 to vector<8x256xf32>
    %2 = arith.maximumf %0, %1 : vector<8x256xf32>
    %c0_1 = arith.constant 0 : index
    %c0_2 = arith.constant 0 : index
    %3 = vector.load %arg2[%c0_1, %c0_2] : memref<8x256xf32, #tpu.memory_space<vmem>>, vector<8x256xf32>
    tpu.vector_store %arg2[%c0_1, %c0_2], %2 {strides = array<i32>} : memref<8x256xf32, #tpu.memory_space<vmem>>, vector<8x256xf32>,
    return
  }
  func.func @transform_0(%arg0: i32) -> (i32, i32) {
    %c0_i32 = arith.constant 0 : i32
    %c0_i32_0 = arith.constant 0 : i32
    return %arg0, %c0_i32 : i32, i32
  }
  func.func @transform_1(%arg0: i32) -> (i32, i32) {
    %c0_i32 = arith.constant 0 : i32
    %c0_i32_0 = arith.constant 0 : i32
    return %arg0, %c0_i32 : i32, i32
  }
}

</mosaic_0001>

<llo_original>
// kernel: my_cell_forward.1
$region0: #{my_cell_forward.1}
  #allocation0 [shape = 'u32[]', space=smem, size = 0x4, offset = 0x4, fixed_abs, tag = 'smem constant byte address 0x4 - core index']
  #allocation1 [shape = 'u32[144,128]{1,0:T(1,128)}', space=vmem, size = 0x12000, scoped, tag = 'internal scratch']
  %s0 = inlined_call_operand.vmem [shape: f32[8,256], index: 0, kind: input, shape index: {}]
  %s1 = inlined_call_operand.vmem [shape: f32[8,256], index: 1, kind: output, shape index: {}]
  %s2 = sld [smem:[#allocation0]]
  $region14: #{my_cell_forward.1} parent=0
    _
  %s4 = ssub.s32 1, %s2
  %s5 = scalar_select 0, %s4, %s2
  // Predicated region
  $region2: #{my_cell_forward.1} parent=0 // pred_check
    _
  $region3: #{my_cell_forward.1} parent=0 // pred_check_branch
    %7 = sbr.rel (0) target = $region5
  $region4: #{my_cell_forward.1} parent=0 // pred_region
    _
  $region5: #{my_cell_forward.1} parent=0 // pred_fallthru
    _
  %v8 = vld [vmem:[%s0] sm:$0xff]
  %v9 = vld [vmem:[%s0 + $0x8] sm:$0xff]
  %v10 = vmax.f32 %v8, 0.0
  %v11 = vmax.f32 %v9, 0.0
  %12 = vst [vmem:[%s1] sm:$0xff] %v10
  %13 = vst [vmem:[%s1 + $0x8] sm:$0xff] %v11
  // Predicated region
  $region6: #{my_cell_forward.1} parent=0 // pred_check
    _
  $region7: #{my_cell_forward.1} parent=0 // pred_check_branch
    %15 = sbr.rel (0) target = $region9
  $region8: #{my_cell_forward.1} parent=0 // pred_region
    _
  $region9: #{my_cell_forward.1} parent=0 // pred_fallthru
    _
  // Predicated region
  $region10: #{my_cell_forward.1} parent=0 // pred_check
    _
  $region11: #{my_cell_forward.1} parent=0 // pred_check_branch
    %17 = sbr.rel (0) target = $region13
  $region12: #{my_cell_forward.1} parent=0 // pred_region
    _
  $region13: #{my_cell_forward.1} parent=0 // pred_fallthru
    _

</llo_original>
